<compile_context>
chip_gen: v7x
topology: tpu7x:2x2x1
jax: 0.10.0
libtpu: 0.0.40
codegen_flags: <defaults>
</compile_context>

<pallas_src>
import functools

import jax
import jax.numpy as jnp
from jax import lax
from jax.experimental import pallas as pl
from jax.experimental.pallas import tpu as pltpu


def _round_up(x, m):
    return ((x + m - 1) // m) * m


def _make_kernel(kernel_size, dilation, c_in, c_out, tile):
    """Per-(batch, time-tile) kernel body; conv hyperparameters are static."""

    def kernel(x_ref, w_ref, b_ref, o_ref, prev_ref):
        # x_ref:    (1, c_in, tile)        current time tile (time on lanes)
        # w_ref:    (c_out, c_in*K)        weight[:, ci, k] at column ci*K + k
        # b_ref:    (c_out, 1)
        # o_ref:    (1, c_out, tile)
        # prev_ref: (c_in, tile)           carry: previous time tile (zeros at i==0)

        @pl.when(pl.program_id(1) == 0)
        def _():
            # Zero carry == causal left zero-padding of the sequence.
            prev_ref[...] = jnp.zeros_like(prev_ref)

        cur = x_ref[0]                               # (c_in, tile)
        curf = cur.astype(jnp.float32)
        prevf = prev_ref[...].astype(jnp.float32)
        w = w_ref[...].astype(jnp.float32)           # (c_out, c_in*K)

        acc = jnp.zeros((c_out, tile), jnp.float32)
        for k in range(kernel_size):
            # Tap k reads x[t - s] relative to the output position t.
            s = (kernel_size - 1 - k) * dilation
            if s == 0:
                shifted = curf
            elif s < tile:
                # Last s columns of the previous tile, then the first tile-s
                # columns of the current tile.
                shifted = jnp.concatenate(
                    [prevf[:, tile - s:], curf[:, :tile - s]], axis=1)
            elif s == tile:
                shifted = prevf
            else:
                # Tap reads only the causal zero padding; can only happen when
                # the whole sequence fits in a single tile (tile >= halo else).
                continue
            for ci in range(c_in):
                j = ci * kernel_size + k
                # (c_out, 1) * (1, tile) -> (c_out, tile) VPU multiply-add.
                acc = acc + w[:, j:j + 1] * shifted[ci:ci + 1, :]

        out = acc + b_ref[...].astype(jnp.float32)   # bias broadcast over lanes
        o_ref[0] = out.astype(o_ref.dtype)
        prev_ref[...] = cur                          # carry for the next tile

    return kernel


def causal_conv1d(x, weight, bias, *, kernel_size, stride=1, padding=0,
                  dilation=1, max_tile=1024):
    """Causal 1-D convolution matching CasualConv1D.forward.

    x:      (N, C_in, T)        float32 / bfloat16
    weight: (C_out, C_in, K)    PyTorch Conv1d layout
    bias:   (C_out,)
    returns (N, C_out, T_out)   T_out = floor((T + 2*padding - 1)/stride) + 1
    """
    n, c_in, _ = x.shape
    c_out = weight.shape[0]
    halo = (kernel_size - 1) * dilation

    # Conv1d's own symmetric padding (rare for causal use) is materialized once;
    # the causal left pad is realized by the zero-initialized carry in-kernel.
    if padding > 0:
        x = jnp.pad(x, ((0, 0), (0, 0), (padding, padding)))
    t_full = x.shape[2]          # stride-1 causal-conv output length

    # Time tiling: last (lane) dim carries time -> lane-dense blocks.
    tile_cap = max(max_tile, _round_up(max(halo, 1), 128))
    if t_full <= tile_cap:
        tile, nt = t_full, 1
    else:
        tile, nt = tile_cap, pl.cdiv(t_full, tile_cap)

    w2 = weight.reshape(c_out, c_in * kernel_size)   # contiguous, free reshape
    b2 = bias.reshape(c_out, 1)

    out = pl.pallas_call(
        _make_kernel(kernel_size, dilation, c_in, c_out, tile),
        out_shape=jax.ShapeDtypeStruct((n, c_out, t_full), x.dtype),
        grid=(n, nt),
        in_specs=[
            pl.BlockSpec((1, c_in, tile), lambda b, i: (b, 0, i)),
            pl.BlockSpec((c_out, c_in * kernel_size), lambda b, i: (0, 0)),
            pl.BlockSpec((c_out, 1), lambda b, i: (0, 0)),
        ],
        out_specs=pl.BlockSpec((1, c_out, tile), lambda b, i: (b, 0, i)),
        scratch_shapes=[pltpu.VMEM((c_in, tile), x.dtype)],
        compiler_params=pltpu.CompilerParams(
            # Batch is parallel (megacore); the time axis carries the halo
            # scratch and must run in order.
            dimension_semantics=("parallel", "arbitrary")),
    )(x, w2, b2)

    if stride > 1:
        # Strided causal conv == stride-1 result decimated by `stride`;
        # avoids strided sublane/lane loads inside the kernel.
        out = out[:, :, ::stride]
    return out


def _reference_causal_conv1d(x_nct, weight, bias, *, kernel_size, stride,
                             padding, dilation):
    """Pure-JAX reference using lax.conv_general_dilated (exact f32)."""
    padding_left = (kernel_size - 1) * dilation
    x_pad = jnp.pad(
        x_nct, ((0, 0), (0, 0), (padding_left + padding, padding)))
    y = lax.conv_general_dilated(
        x_pad, weight,
        window_strides=(stride,),
        padding="VALID",
        rhs_dilation=(dilation,),
        dimension_numbers=("NCH", "OIH", "NCH"),
        precision=lax.Precision.HIGHEST,
    )
    return y + bias[None, :, None]


def _run_case(key, *, n, c_in, c_out, k, stride, padding, dilation, t):
    kx, kw, kb = jax.random.split(key, 3)
    bound = 1.0 / float(c_in * k) ** 0.5
    weight = jax.random.uniform(kw, (c_out, c_in, k), minval=-bound,
                                maxval=bound, dtype=jnp.float32)
    bias = jax.random.uniform(kb, (c_out,), minval=-bound, maxval=bound,
                              dtype=jnp.float32)
    x = jax.random.normal(kx, (n, c_in, t), jnp.float32)

    conv = jax.jit(functools.partial(
        causal_conv1d, kernel_size=k, stride=stride, padding=padding,
        dilation=dilation))
    out = jax.block_until_ready(conv(x, weight, bias))
    ref = _reference_causal_conv1d(
        x, weight, bias, kernel_size=k, stride=stride, padding=padding,
        dilation=dilation)

    assert out.shape == ref.shape, (out.shape, ref.shape)
    err = float(jnp.max(jnp.abs(out - ref)))
    assert err < 1e-4, err


if __name__ == "__main__":
    key = jax.random.PRNGKey(0)
    k0, k1, k2 = jax.random.split(key, 3)

    # Primary small case: TIMNet-style dilated causal conv.
    _run_case(k0, n=2, c_in=4, c_out=8, k=3, stride=1, padding=0,
              dilation=2, t=16)
    # Longer sequence: exercises the (batch, time-tile) grid, the partial
    # last tile and the cross-tile halo carry.
    _run_case(k1, n=2, c_in=4, c_out=8, k=3, stride=1, padding=0,
              dilation=4, t=1536)
    # stride / padding generality (decimation + symmetric-pad wrapper path).
    _run_case(k2, n=2, c_in=4, c_out=8, k=3, stride=2, padding=1,
              dilation=1, t=50)

    print("KERNEL_OK")
</pallas_src>

<mosaic_0001>
module attributes {stable_mosaic.version = 11 : i64} {
  func.func @kernel(%arg0: i32, %arg1: i32, %arg2: memref<1x4x16xf32, #tpu.memory_space<vmem>>, %arg3: memref<8x12xf32, #tpu.memory_space<vmem>>, %arg4: memref<8x1xf32, #tpu.memory_space<vmem>>, %arg5: memref<1x8x16xf32, #tpu.memory_space<vmem>>, %arg6: memref<4x16xf32, #tpu.memory_space<vmem>>) attributes {dimension_semantics = [#tpu.dimension_semantics<parallel>, #tpu.dimension_semantics<arbitrary>], iteration_bounds = array<i64: 2, 1>, scalar_prefetch = 0 : i64, scratch_operands = 1 : i64, tpu.core_type = #tpu.core_type<tc>, window_params = [{transform_indices = @transform_0, window_bounds = array<i64: 1, 4, 16>}, {pipeline_mode = #tpu.pipeline_mode<synchronous>, transform_indices = @transform_1, window_bounds = array<i64: 8, 12>}, {pipeline_mode = #tpu.pipeline_mode<synchronous>, transform_indices = @transform_2, window_bounds = array<i64: 8, 1>}, {transform_indices = @transform_3, window_bounds = array<i64: 1, 8, 16>}]} {
    %c0_i32 = arith.constant 0 : i32
    %0 = arith.cmpi eq, %arg1, %c0_i32 : i32
    %1 = arith.extui %0 : i1 to i32
    %c0_i32_0 = arith.constant 0 : i32
    %2 = arith.cmpi ne, %1, %c0_i32_0 : i32
    scf.if %2 {
      %cst_14 = arith.constant 0.000000e+00 : f32
      %93 = vector.broadcast %cst_14 : f32 to vector<4x16xf32>
      %c0_15 = arith.constant 0 : index
      %c0_16 = arith.constant 0 : index
      %94 = vector.load %arg6[%c0_15, %c0_16] : memref<4x16xf32, #tpu.memory_space<vmem>>, vector<4x16xf32>
      tpu.vector_store %arg6[%c0_15, %c0_16], %93 {strides = array<i32>} : memref<4x16xf32, #tpu.memory_space<vmem>>, vector<4x16xf32>,
    } else {
    }
    %c0 = arith.constant 0 : index
    %c0_1 = arith.constant 0 : index
    %c0_2 = arith.constant 0 : index
    %3 = vector.load %arg2[%c0, %c0_1, %c0_2] : memref<1x4x16xf32, #tpu.memory_space<vmem>>, vector<1x4x16xf32>
    %4 = vector.shape_cast %3 : vector<1x4x16xf32> to vector<4x16xf32>
    %c0_3 = arith.constant 0 : index
    %c0_4 = arith.constant 0 : index
    %5 = vector.load %arg6[%c0_3, %c0_4] : memref<4x16xf32, #tpu.memory_space<vmem>>, vector<4x16xf32>
    %c0_5 = arith.constant 0 : index
    %c0_6 = arith.constant 0 : index
    %6 = vector.load %arg3[%c0_5, %c0_6] : memref<8x12xf32, #tpu.memory_space<vmem>>, vector<8x12xf32>
    %cst = arith.constant 0.000000e+00 : f32
    %7 = vector.broadcast %cst : f32 to vector<8x16xf32>
    %8 = vector.extract_strided_slice %5 {offsets = [0, 12], sizes = [4, 4], strides = [1, 1]} : vector<4x16xf32> to vector<4x4xf32>
    %9 = vector.extract_strided_slice %4 {offsets = [0, 0], sizes = [4, 12], strides = [1, 1]} : vector<4x16xf32> to vector<4x12xf32>
    %10 = tpu.concatenate %8, %9 in 1 : vector<4x4xf32>, vector<4x12xf32> -> vector<4x16xf32>
    %11 = vector.extract_strided_slice %6 {offsets = [0, 0], sizes = [8, 1], strides = [1, 1]} : vector<8x12xf32> to vector<8x1xf32>
    %12 = vector.extract_strided_slice %10 {offsets = [0, 0], sizes = [1, 16], strides = [1, 1]} : vector<4x16xf32> to vector<1x16xf32>
    %13 = vector.broadcast %11 : vector<8x1xf32> to vector<8x16xf32>
    %14 = vector.broadcast %12 : vector<1x16xf32> to vector<8x16xf32>
    %15 = arith.mulf %13, %14 : vector<8x16xf32>
    %16 = arith.addf %7, %15 : vector<8x16xf32>
    %17 = vector.extract_strided_slice %6 {offsets = [0, 3], sizes = [8, 1], strides = [1, 1]} : vector<8x12xf32> to vector<8x1xf32>
    %18 = vector.extract_strided_slice %10 {offsets = [1, 0], sizes = [1, 16], strides = [1, 1]} : vector<4x16xf32> to vector<1x16xf32>
    %19 = vector.broadcast %17 : vector<8x1xf32> to vector<8x16xf32>
    %20 = vector.broadcast %18 : vector<1x16xf32> to vector<8x16xf32>
    %21 = arith.mulf %19, %20 : vector<8x16xf32>
    %22 = arith.addf %16, %21 : vector<8x16xf32>
    %23 = vector.extract_strided_slice %6 {offsets = [0, 6], sizes = [8, 1], strides = [1, 1]} : vector<8x12xf32> to vector<8x1xf32>
    %24 = vector.extract_strided_slice %10 {offsets = [2, 0], sizes = [1, 16], strides = [1, 1]} : vector<4x16xf32> to vector<1x16xf32>
    %25 = vector.broadcast %23 : vector<8x1xf32> to vector<8x16xf32>
    %26 = vector.broadcast %24 : vector<1x16xf32> to vector<8x16xf32>
    %27 = arith.mulf %25, %26 : vector<8x16xf32>
    %28 = arith.addf %22, %27 : vector<8x16xf32>
    %29 = vector.extract_strided_slice %6 {offsets = [0, 9], sizes = [8, 1], strides = [1, 1]} : vector<8x12xf32> to vector<8x1xf32>
    %30 = vector.extract_strided_slice %10 {offsets = [3, 0], sizes = [1, 16], strides = [1, 1]} : vector<4x16xf32> to vector<1x16xf32>
    %31 = vector.broadcast %29 : vector<8x1xf32> to vector<8x16xf32>
    %32 = vector.broadcast %30 : vector<1x16xf32> to vector<8x16xf32>
    %33 = arith.mulf %31, %32 : vector<8x16xf32>
    %34 = arith.addf %28, %33 : vector<8x16xf32>
    %35 = vector.extract_strided_slice %5 {offsets = [0, 14], sizes = [4, 2], strides = [1, 1]} : vector<4x16xf32> to vector<4x2xf32>
    %36 = vector.extract_strided_slice %4 {offsets = [0, 0], sizes = [4, 14], strides = [1, 1]} : vector<4x16xf32> to vector<4x14xf32>
    %37 = tpu.concatenate %35, %36 in 1 : vector<4x2xf32>, vector<4x14xf32> -> vector<4x16xf32>
    %38 = vector.extract_strided_slice %6 {offsets = [0, 1], sizes = [8, 1], strides = [1, 1]} : vector<8x12xf32> to vector<8x1xf32>
    %39 = vector.extract_strided_slice %37 {offsets = [0, 0], sizes = [1, 16], strides = [1, 1]} : vector<4x16xf32> to vector<1x16xf32>
    %40 = vector.broadcast %38 : vector<8x1xf32> to vector<8x16xf32>
    %41 = vector.broadcast %39 : vector<1x16xf32> to vector<8x16xf32>
    %42 = arith.mulf %40, %41 : vector<8x16xf32>
    %43 = arith.addf %34, %42 : vector<8x16xf32>
    %44 = vector.extract_strided_slice %6 {offsets = [0, 4], sizes = [8, 1], strides = [1, 1]} : vector<8x12xf32> to vector<8x1xf32>
    %45 = vector.extract_strided_slice %37 {offsets = [1, 0], sizes = [1, 16], strides = [1, 1]} : vector<4x16xf32> to vector<1x16xf32>
    %46 = vector.broadcast %44 : vector<8x1xf32> to vector<8x16xf32>
    %47 = vector.broadcast %45 : vector<1x16xf32> to vector<8x16xf32>
    %48 = arith.mulf %46, %47 : vector<8x16xf32>
    %49 = arith.addf %43, %48 : vector<8x16xf32>
    %50 = vector.extract_strided_slice %6 {offsets = [0, 7], sizes = [8, 1], strides = [1, 1]} : vector<8x12xf32> to vector<8x1xf32>
    %51 = vector.extract_strided_slice %37 {offsets = [2, 0], sizes = [1, 16], strides = [1, 1]} : vector<4x16xf32> to vector<1x16xf32>
    %52 = vector.broadcast %50 : vector<8x1xf32> to vector<8x16xf32>
    %53 = vector.broadcast %51 : vector<1x16xf32> to vector<8x16xf32>
    %54 = arith.mulf %52, %53 : vector<8x16xf32>
    %55 = arith.addf %49, %54 : vector<8x16xf32>
    %56 = vector.extract_strided_slice %6 {offsets = [0, 10], sizes = [8, 1], strides = [1, 1]} : vector<8x12xf32> to vector<8x1xf32>
    %57 = vector.extract_strided_slice %37 {offsets = [3, 0], sizes = [1, 16], strides = [1, 1]} : vector<4x16xf32> to vector<1x16xf32>
    %58 = vector.broadcast %56 : vector<8x1xf32> to vector<8x16xf32>
    %59 = vector.broadcast %57 : vector<1x16xf32> to vector<8x16xf32>
    %60 = arith.mulf %58, %59 : vector<8x16xf32>
    %61 = arith.addf %55, %60 : vector<8x16xf32>
    %62 = vector.extract_strided_slice %6 {offsets = [0, 2], sizes = [8, 1], strides = [1, 1]} : vector<8x12xf32> to vector<8x1xf32>
    %63 = vector.extract_strided_slice %4 {offsets = [0, 0], sizes = [1, 16], strides = [1, 1]} : vector<4x16xf32> to vector<1x16xf32>
    %64 = vector.broadcast %62 : vector<8x1xf32> to vector<8x16xf32>
    %65 = vector.broadcast %63 : vector<1x16xf32> to vector<8x16xf32>
    %66 = arith.mulf %64, %65 : vector<8x16xf32>
    %67 = arith.addf %61, %66 : vector<8x16xf32>
    %68 = vector.extract_strided_slice %6 {offsets = [0, 5], sizes = [8, 1], strides = [1, 1]} : vector<8x12xf32> to vector<8x1xf32>
    %69 = vector.extract_strided_slice %4 {offsets = [1, 0], sizes = [1, 16], strides = [1, 1]} : vector<4x16xf32> to vector<1x16xf32>
    %70 = vector.broadcast %68 : vector<8x1xf32> to vector<8x16xf32>
    %71 = vector.broadcast %69 : vector<1x16xf32> to vector<8x16xf32>
    %72 = arith.mulf %70, %71 : vector<8x16xf32>
    %73 = arith.addf %67, %72 : vector<8x16xf32>
    %74 = vector.extract_strided_slice %6 {offsets = [0, 8], sizes = [8, 1], strides = [1, 1]} : vector<8x12xf32> to vector<8x1xf32>
    %75 = vector.extract_strided_slice %4 {offsets = [2, 0], sizes = [1, 16], strides = [1, 1]} : vector<4x16xf32> to vector<1x16xf32>
    %76 = vector.broadcast %74 : vector<8x1xf32> to vector<8x16xf32>
    %77 = vector.broadcast %75 : vector<1x16xf32> to vector<8x16xf32>
    %78 = arith.mulf %76, %77 : vector<8x16xf32>
    %79 = arith.addf %73, %78 : vector<8x16xf32>
    %80 = vector.extract_strided_slice %6 {offsets = [0, 11], sizes = [8, 1], strides = [1, 1]} : vector<8x12xf32> to vector<8x1xf32>
    %81 = vector.extract_strided_slice %4 {offsets = [3, 0], sizes = [1, 16], strides = [1, 1]} : vector<4x16xf32> to vector<1x16xf32>
    %82 = vector.broadcast %80 : vector<8x1xf32> to vector<8x16xf32>
    %83 = vector.broadcast %81 : vector<1x16xf32> to vector<8x16xf32>
    %84 = arith.mulf %82, %83 : vector<8x16xf32>
    %85 = arith.addf %79, %84 : vector<8x16xf32>
    %c0_7 = arith.constant 0 : index
    %c0_8 = arith.constant 0 : index
    %86 = vector.load %arg4[%c0_7, %c0_8] : memref<8x1xf32, #tpu.memory_space<vmem>>, vector<8x1xf32>
    %87 = vector.broadcast %86 : vector<8x1xf32> to vector<8x16xf32>
    %88 = arith.addf %85, %87 : vector<8x16xf32>
    %c0_9 = arith.constant 0 : index
    %c0_10 = arith.constant 0 : index
    %c0_11 = arith.constant 0 : index
    %89 = vector.load %arg5[%c0_9, %c0_10, %c0_11] : memref<1x8x16xf32, #tpu.memory_space<vmem>>, vector<1x8x16xf32>
    %90 = vector.shape_cast %89 : vector<1x8x16xf32> to vector<8x16xf32>
    %91 = vector.shape_cast %88 : vector<8x16xf32> to vector<1x8x16xf32>
    tpu.vector_store %arg5[%c0_9, %c0_10, %c0_11], %91 {strides = array<i32>} : memref<1x8x16xf32, #tpu.memory_space<vmem>>, vector<1x8x16xf32>,
    %c0_12 = arith.constant 0 : index
    %c0_13 = arith.constant 0 : index
    %92 = vector.load %arg6[%c0_12, %c0_13] : memref<4x16xf32, #tpu.memory_space<vmem>>, vector<4x16xf32>
    tpu.vector_store %arg6[%c0_12, %c0_13], %4 {strides = array<i32>} : memref<4x16xf32, #tpu.memory_space<vmem>>, vector<4x16xf32>,
    return
  }
  func.func @transform_0(%arg0: i32, %arg1: i32) -> (i32, i32, i32) {
    %c0_i32 = arith.constant 0 : i32
    %c0_i32_0 = arith.constant 0 : i32
    return %arg0, %c0_i32, %arg1 : i32, i32, i32
  }
  func.func @transform_1(%arg0: i32, %arg1: i32) -> (i32, i32) {
    %c0_i32 = arith.constant 0 : i32
    %c0_i32_0 = arith.constant 0 : i32
    %c0_i32_1 = arith.constant 0 : i32
    return %c0_i32, %c0_i32_0 : i32, i32
  }
  func.func @transform_2(%arg0: i32, %arg1: i32) -> (i32, i32) {
    %c0_i32 = arith.constant 0 : i32
    %c0_i32_0 = arith.constant 0 : i32
    %c0_i32_1 = arith.constant 0 : i32
    return %c0_i32, %c0_i32_0 : i32, i32
  }
  func.func @transform_3(%arg0: i32, %arg1: i32) -> (i32, i32, i32) {
    %c0_i32 = arith.constant 0 : i32
    %c0_i32_0 = arith.constant 0 : i32
    return %arg0, %c0_i32, %arg1 : i32, i32, i32
  }
}

</mosaic_0001>

<llo_original>
// kernel: causal_conv1d.1
$region0: #{causal_conv1d.1}
  #allocation0 [shape = 'u32[]', space=smem, size = 0x4, offset = 0x4, fixed_abs, tag = 'smem constant byte address 0x4 - core index']
  #allocation1 [shape = 'u32[144,128]{1,0:T(1,128)}', space=vmem, size = 0x12000, scoped, tag = 'internal scratch']
  #allocation2 [shape = 'f32[4,16]{1,0:T(4,128)}', space=vmem, size = 0x800, scoped, tag = 'scratch operand']
  %s0 = inlined_call_operand.vmem [shape: f32[2,4,16], index: 0, kind: input, shape index: {}]
  %s1 = inlined_call_operand.vmem [shape: f32[8,12], index: 1, kind: input, shape index: {}]
  %s2 = inlined_call_operand.vmem [shape: f32[8,1], index: 2, kind: input, shape index: {}]
  %s3 = inlined_call_operand.hbm [shape: f32[2,8,16], index: 3, kind: output, shape index: {}]
  %s4 = sld [smem:[#allocation0]]
  $region49: #{causal_conv1d.1} parent=0
    _
  %s6 = ssub.s32 1, %s4
  %s7 = scalar_select 0, %s6, %s4
  $region1: #{causal_conv1d.1} parent=0
    #allocation3 [shape = 'u8[8192]{0}', space=vmem, size = 0x2000, scoped, tag = 'output window, operand 0']
    #allocation4 [shape = 's32[2]{0}', space=sflag, size = 0x8, scoped, tag = 'scoped memory for causal_conv1d.1']
    %8 = vsyncpa [#allocation4], 0
    %s9 = scalar_lea.sflag [#allocation4], 1
    %10 = vsyncpa %s9, 0
    loop: start=0, step=1, limit=4
    $region2: #{causal_conv1d.1} parent=1 // loop_pre_header
      _
    $region3: #{causal_conv1d.1} parent=1 // loop_header
      %s12 = sphi 0, %s16
      %p13 = scmp.ge.s32.totalorder %s12, 4
      %s19 = sphi 0, %s31
      %s20 = sphi 0, %s27
      %s21 = sphi 0, %s19
      %s22 = sphi 0, %s20
      %s23 = sphi 0, %s21
      %s24 = sphi 0, %s22
      %s36 = sphi 0, %s38
      %s39 = sphi 0, %s36
      %s40 = sphi 0, %s39
      %s56 = sphi 0, %s40
      %s60 = sphi 0, %s60
      %s62 = sphi 0, %s60
      %s63 = sphi 0, %s62
      %s77 = sphi 0, %s63
      %s81 = sphi 0, %s81
      %s83 = sphi 0, %s81
      %s84 = sphi 0, %s83
      %s98 = sphi 0, %s84
      %s106 = sphi 0, %s108
      %s109 = sphi 0, %s106
      %s110 = sphi 0, %s109
      %s126 = sphi 0, %s110
    $region4: #{causal_conv1d.1} parent=1 // loop_header_branch
      %15 = sbr.rel (%p13) target = $region8
    $region5: #{causal_conv1d.1} parent=1 // loop_body
      %s17 = ssub.s32 %s12, 1
      %s18 = ssub.s32 %s12, 2
      %s25 = sadd.s32 1, %s20
      %p26 = scmp.ge.s32.totalorder %s25, 1
      %s27 = scalar_select %p26, 0, %s25
      %s28 = sadd.s32 1, %s19
      %s29 = scalar_select %p26, %s28, %s19
      %p30 = scmp.ge.s32.totalorder %s29, 2
      %s31 = scalar_select %p30, 0, %s29
      %s32 = ssub.s32 %s19, %s31
      %s33 = ssub.s32 %s20, %s27
      %s34 = sor.u32 %s32, %s33
      %p35 = scmp.eq.s32.totalorder %s34, 0
      %s37 = sadd.s32 %s36, 1
      %s38 = scalar_select %p35, %s36, %s37
      %p41 = pneg %p35
      %p42 = scmp.eq.s32.totalorder %s12, 1
      %p43 = por %p41, %p42
      %p44 = scmp.ne.s32.totalorder %s36, %s39
      %p45 = scmp.eq.s32.totalorder %s12, 0
      %p46 = por %p44, %p45
      %p47 = scmp.ne.s32.totalorder %s36, %s39
      %p48 = scmp.eq.s32.totalorder %s17, 1
      %p49 = por %p47, %p48
      %p50 = scmp.ne.s32.totalorder %s39, %s40
      %p51 = scmp.eq.s32.totalorder %s17, 0
      %p52 = por %p50, %p51
      %p53 = scmp.ne.s32.totalorder %s39, %s40
      %p54 = scmp.eq.s32.totalorder %s18, 1
      %p55 = por %p53, %p54
      %p57 = scmp.ne.s32.totalorder %s40, %s56
      %p58 = scmp.eq.s32.totalorder %s18, 0
      %p59 = por %p57, %p58
      %s61 = sadd.s32 %s60, 1
      %p64 = scmp.eq.s32.totalorder %s12, 1
      %p65 = scmp.ne.s32.totalorder %s60, %s62
      %p66 = scmp.eq.s32.totalorder %s12, 0
      %p67 = por %p65, %p66
      %p68 = scmp.ne.s32.totalorder %s60, %s62
      %p69 = scmp.eq.s32.totalorder %s17, 1
      %p70 = por %p68, %p69
      %p71 = scmp.ne.s32.totalorder %s62, %s63
      %p72 = scmp.eq.s32.totalorder %s17, 0
      %p73 = por %p71, %p72
      %p74 = scmp.ne.s32.totalorder %s62, %s63
      %p75 = scmp.eq.s32.totalorder %s18, 1
      %p76 = por %p74, %p75
      %p78 = scmp.ne.s32.totalorder %s63, %s77
      %p79 = scmp.eq.s32.totalorder %s18, 0
      %p80 = por %p78, %p79
      %s82 = sadd.s32 %s81, 1
      %p85 = scmp.eq.s32.totalorder %s12, 1
      %p86 = scmp.ne.s32.totalorder %s81, %s83
      %p87 = scmp.eq.s32.totalorder %s12, 0
      %p88 = por %p86, %p87
      %p89 = scmp.ne.s32.totalorder %s81, %s83
      %p90 = scmp.eq.s32.totalorder %s17, 1
      %p91 = por %p89, %p90
      %p92 = scmp.ne.s32.totalorder %s83, %s84
      %p93 = scmp.eq.s32.totalorder %s17, 0
      %p94 = por %p92, %p93
      %p95 = scmp.ne.s32.totalorder %s83, %s84
      %p96 = scmp.eq.s32.totalorder %s18, 1
      %p97 = por %p95, %p96
      %p99 = scmp.ne.s32.totalorder %s84, %s98
      %p100 = scmp.eq.s32.totalorder %s18, 0
      %p101 = por %p99, %p100
      %s102 = ssub.s32 %s19, %s31
      %s103 = ssub.s32 %s20, %s27
      %s104 = sor.u32 %s102, %s103
      %p105 = scmp.eq.s32.totalorder %s104, 0
      %s107 = sadd.s32 %s106, 1
      %s108 = scalar_select %p105, %s106, %s107
      %p111 = pneg %p105
      %p112 = scmp.eq.s32.totalorder %s12, 1
      %p113 = por %p111, %p112
      %p114 = scmp.ne.s32.totalorder %s106, %s109
      %p115 = scmp.eq.s32.totalorder %s12, 0
      %p116 = por %p114, %p115
      %p117 = scmp.ne.s32.totalorder %s106, %s109
      %p118 = scmp.eq.s32.totalorder %s17, 1
      %p119 = por %p117, %p118
      %p120 = scmp.ne.s32.totalorder %s109, %s110
      %p121 = scmp.eq.s32.totalorder %s17, 0
      %p122 = por %p120, %p121
      %p123 = scmp.ne.s32.totalorder %s109, %s110
      %p124 = scmp.eq.s32.totalorder %s18, 1
      %p125 = por %p123, %p124
      %p127 = scmp.ne.s32.totalorder %s110, %s126
      %p128 = scmp.eq.s32.totalorder %s18, 0
      %p129 = por %p127, %p128
      %p130 = scmp.le.s32.totalorder 1, %s12
      %p131 = scmp.lt.s32.totalorder %s12, 3
      %p132 = pnand %p130, %p131
      %p133 = pneg %p132
      // Predicated region
      $region9: #{causal_conv1d.1} parent=5 // pred_check
        _
      $region10: #{causal_conv1d.1} parent=5 // pred_check_branch
        %135 = sbr.rel (%p132) target = $region12
      $region11: #{causal_conv1d.1} parent=5 // pred_region
        %s136 = ssub.s32 %s12, 1
        // Predicated region
        $region13: #{causal_conv1d.1} parent=11 // pred_check
          %p137 = pneg %p73
        $region14: #{causal_conv1d.1} parent=11 // pred_check_branch
          %139 = sbr.rel (%p137) target = $region16
        $region15: #{causal_conv1d.1} parent=11 // pred_region
          _
        $region16: #{causal_conv1d.1} parent=11 // pred_fallthru
          _
        // Predicated region
        $region17: #{causal_conv1d.1} parent=11 // pred_check
          %p140 = pneg %p94
        $region18: #{causal_conv1d.1} parent=11 // pred_check_branch
          %142 = sbr.rel (%p140) target = $region20
        $region19: #{causal_conv1d.1} parent=11 // pred_region
          _
        $region20: #{causal_conv1d.1} parent=11 // pred_fallthru
          _
      $region12: #{causal_conv1d.1} parent=5 // pred_fallthru
        _
      %p143 = scmp.lt.s32.totalorder %s12, 2
      // Predicated region
      $region21: #{causal_conv1d.1} parent=5 // pred_check
        %p144 = pneg %p143
      $region22: #{causal_conv1d.1} parent=5 // pred_check_branch
        %146 = sbr.rel (%p144) target = $region24
      $region23: #{causal_conv1d.1} parent=5 // pred_region
        // Predicated region
        $region25: #{causal_conv1d.1} parent=23 // pred_check
          %p147 = pneg %p46
        $region26: #{causal_conv1d.1} parent=23 // pred_check_branch
          %149 = sbr.rel (%p147) target = $region28
        $region27: #{causal_conv1d.1} parent=23 // pred_region
          %p150 = scmp.lt.s32.totalorder %s19, 1
          %s151 = scalar_select %p150, %s19, 1
          %p152 = scmp.lt.s32.totalorder %s20, 0
          %s153 = scalar_select %p152, %s20, 0
          %s154 = sadd.s32 %s153, %s151
          %s155 = smul.addr %s154, 4
          %s156 = scalar_lea.vmem %s0, %s155
        $region28: #{causal_conv1d.1} parent=23 // pred_fallthru
          _
      $region24: #{causal_conv1d.1} parent=5 // pred_fallthru
        _
      %p157 = scmp.le.s32.totalorder 1, %s12
      %p158 = scmp.lt.s32.totalorder %s12, 3
      %p159 = pnand %p157, %p158
      %p160 = pneg %p159
      // Predicated region
      $region29: #{causal_conv1d.1} parent=5 // pred_check
        _
      $region30: #{causal_conv1d.1} parent=5 // pred_check_branch
        %162 = sbr.rel (%p159) target = $region32
      $region31: #{causal_conv1d.1} parent=5 // pred_region
        %s163 = ssub.s32 %s12, 1
        %p164 = scmp.lt.s32.totalorder %s21, 1
        %s165 = scalar_select %p164, %s21, 1
        %p166 = scmp.lt.s32.totalorder %s22, 0
        %s167 = scalar_select %p166, %s22, 0
        %s168 = sadd.s32 %s167, %s165
        %s169 = smul.addr %s168, 4
        %s170 = scalar_lea.vmem %s0, %s169
        %p171 = pneg %p52
        %p172 = pneg %p49
        %p173 = pneg %p73
        %p174 = pneg %p70
        %p175 = pneg %p94
        %p176 = pneg %p91
        %p177 = pneg %p122
        %p178 = pneg %p119
        %s179 = sand.u32 %s109, 1
        %s180 = scalar_lea.sflag [#allocation4], %s179
        %s181 = sand.u32 %s109, 1
        %s182 = smul.addr %s181, 8
        %s183 = scalar_lea.vmem [#allocation3], %s182
        %p184 = scmp.lt.s32.totalorder %s21, 1
        %s185 = scalar_select %p184, %s21, 1
        %p186 = scmp.lt.s32.totalorder %s22, 0
        %s187 = scalar_select %p186, %s22, 0
        %s188 = sadd.s32 %s187, %s185
        %s189 = smul.addr %s188, 4
        %s190 = scalar_lea.vmem %s0, %s189
        %p191 = scmp.eq.s32.totalorder %s22, 0
        // Predicated region
        $region33: #{causal_conv1d.1} parent=31 // pred_check
          %p192 = pneg %p191
        $region34: #{causal_conv1d.1} parent=31 // pred_check_branch
          %194 = sbr.rel (%p192) target = $region36
        $region35: #{causal_conv1d.1} parent=31 // pred_region
          %vm195 = vcmask 125952
          %196 = vst.msk [vmem:[#allocation2] sm:$0xf] %vm195, 0.0
        $region36: #{causal_conv1d.1} parent=31 // pred_fallthru
          _
        %v197 = vld [vmem:[%s190] sm:$0xf]
        %v198 = vld [vmem:[#allocation2] sm:$0xf]
        %v199 = vld [vmem:[%s1] sm:$0xff]
        %201 = vrot.lane.b32.xlu0 %v198, 116
        %v202 = vpop.permute.xlu0 %201
        %205 = vrot.lane.b32.xlu0 %v197, 4
        %v206 = vpop.permute.xlu0 %205
        %vm208 = vcmask 31744
        %v209 = vsel %vm208, %v202, %v206
        %211 = vset.pattern.permute.xlu0 0
        %212 = vperm.xlu0 %211, %v199
        %v213 = vpop.permute.xlu0 %212
        %v215 = vlaneseq
        %v216 = vshrl.u32 %v215, 7
        %v217 = vsub.s32 0, %v216
        %v218 = vrot.slane %v209, %v217
        %v219 = vmul.f32 %v213, %v218
        %v220 = vadd.f32 %v219, 0.0
        %221 = vset.pattern.permute.xlu0 3
        %222 = vperm.xlu0 %221, %v199
        %v223 = vpop.permute.xlu0 %222
        %v225 = vlaneseq
        %v226 = vshrl.u32 %v225, 7
        %v227 = vsub.s32 1, %v226
        %v228 = vrot.slane %v209, %v227
        %v229 = vmul.f32 %v223, %v228
        %v230 = vadd.f32 %v220, %v229
        %231 = vset.pattern.permute.xlu0 6
        %232 = vperm.xlu0 %231, %v199
        %v233 = vpop.permute.xlu0 %232
        %v235 = vlaneseq
        %v236 = vshrl.u32 %v235, 7
        %v237 = vsub.s32 2, %v236
        %v238 = vrot.slane %v209, %v237
        %v239 = vmul.f32 %v233, %v238
        %v240 = vadd.f32 %v230, %v239
        %241 = vset.pattern.permute.xlu0 9
        %242 = vperm.xlu0 %241, %v199
        %v243 = vpop.permute.xlu0 %242
        %v245 = vlaneseq
        %v246 = vshrl.u32 %v245, 7
        %v247 = vsub.s32 3, %v246
        %v248 = vrot.slane %v209, %v247
        %v249 = vmul.f32 %v243, %v248
        %v250 = vadd.f32 %v240, %v249
        %251 = vrot.lane.b32.xlu0 %v198, 114
        %v252 = vpop.permute.xlu0 %251
        %254 = vrot.lane.b32.xlu0 %v197, 2
        %v255 = vpop.permute.xlu0 %254
        %vm257 = vcmask 15360
        %v258 = vsel %vm257, %v252, %v255
        %259 = vset.pattern.permute.xlu0 1
        %260 = vperm.xlu0 %259, %v199
        %v261 = vpop.permute.xlu0 %260
        %v263 = vlaneseq
        %v264 = vshrl.u32 %v263, 7
        %v265 = vsub.s32 0, %v264
        %v266 = vrot.slane %v258, %v265
        %v267 = vmul.f32 %v261, %v266
        %v268 = vadd.f32 %v250, %v267
        %269 = vset.pattern.permute.xlu0 4
        %270 = vperm.xlu0 %269, %v199
        %v271 = vpop.permute.xlu0 %270
        %v273 = vlaneseq
        %v274 = vshrl.u32 %v273, 7
        %v275 = vsub.s32 1, %v274
        %v276 = vrot.slane %v258, %v275
        %v277 = vmul.f32 %v271, %v276
        %v278 = vadd.f32 %v268, %v277
        %279 = vset.pattern.permute.xlu0 7
        %280 = vperm.xlu0 %279, %v199
        %v281 = vpop.permute.xlu0 %280
        %v283 = vlaneseq
        %v284 = vshrl.u32 %v283, 7
        %v285 = vsub.s32 2, %v284
        %v286 = vrot.slane %v258, %v285
        %v287 = vmul.f32 %v281, %v286
        %v288 = vadd.f32 %v278, %v287
        %289 = vset.pattern.permute.xlu0 10
        %290 = vperm.xlu0 %289, %v199
        %v291 = vpop.permute.xlu0 %290
        %v293 = vlaneseq
        %v294 = vshrl.u32 %v293, 7
        %v295 = vsub.s32 3, %v294
        %v296 = vrot.slane %v258, %v295
        %v297 = vmul.f32 %v291, %v296
        %v298 = vadd.f32 %v288, %v297
        %299 = vset.pattern.permute.xlu0 2
        %300 = vperm.xlu0 %299, %v199
        %v301 = vpop.permute.xlu0 %300
        %v303 = vlaneseq
        %v304 = vshrl.u32 %v303, 7
        %v305 = vsub.s32 0, %v304
        %v306 = vrot.slane %v197, %v305
        %v307 = vmul.f32 %v301, %v306
        %v308 = vadd.f32 %v298, %v307
        %309 = vset.pattern.permute.xlu0 5
        %310 = vperm.xlu0 %309, %v199
        %v311 = vpop.permute.xlu0 %310
        %v313 = vlaneseq
        %v314 = vshrl.u32 %v313, 7
        %v315 = vsub.s32 1, %v314
        %v316 = vrot.slane %v197, %v315
        %v317 = vmul.f32 %v311, %v316
        %v318 = vadd.f32 %v308, %v317
        %319 = vset.pattern.permute.xlu0 8
        %320 = vperm.xlu0 %319, %v199
        %v321 = vpop.permute.xlu0 %320
        %v323 = vlaneseq
        %v324 = vshrl.u32 %v323, 7
        %v325 = vsub.s32 2, %v324
        %v326 = vrot.slane %v197, %v325
        %v327 = vmul.f32 %v321, %v326
        %v328 = vadd.f32 %v318, %v327
        %329 = vset.pattern.permute.xlu0 11
        %330 = vperm.xlu0 %329, %v199
        %v331 = vpop.permute.xlu0 %330
        %v333 = vlaneseq
        %v334 = vshrl.u32 %v333, 7
        %v335 = vsub.s32 3, %v334
        %v336 = vrot.slane %v197, %v335
        %v337 = vmul.f32 %v331, %v336
        %v338 = vadd.f32 %v328, %v337
        %v339 = vld [vmem:[%s2] sm:$0xff]
        %341 = vset.pattern.permute.xlu0 0
        %342 = vperm.xlu0 %341, %v339
        %v343 = vpop.permute.xlu0 %342
        %v345 = vadd.f32 %v338, %v343
        %vm346 = vcmask 130048
        %347 = vst.msk [vmem:[%s183] sm:$0xff] %vm346, %v345
        %vm348 = vcmask 125952
        %349 = vst.msk [vmem:[#allocation2] sm:$0xf] %vm348, %v197
        %s350 = sand.u32 %s109, 1
        %s351 = scalar_lea.sflag [#allocation4], %s350
        %s352 = sand.u32 %s109, 1
        %s353 = smul.addr %s352, 8
        %s354 = scalar_lea.vmem [#allocation3], %s353
        // Predicated region
        $region37: #{causal_conv1d.1} parent=31 // pred_check
          %p355 = pneg %p119
        $region38: #{causal_conv1d.1} parent=31 // pred_check_branch
          %357 = sbr.rel (%p355) target = $region40
        $region39: #{causal_conv1d.1} parent=31 // pred_region
          %s359 = ssub.s32 128, 128
          %360 = vsyncadd %s351, %s359
          %s361 = sadd.s32 %s22, %s21
          %s362 = smul.addr %s361, 128
          %s363 = scalar_lea.hbm %s3, %s362
          %s365 = sshll.u32 %s354, 4
          %s366 = int_to_ptr.vmem [resolvable:$true] %s365
          %368 = dma.vmem_to_hbm [thread:$0]  %s366, 128, %s363, %s351
        $region40: #{causal_conv1d.1} parent=31 // pred_fallthru
          _
      $region32: #{causal_conv1d.1} parent=5 // pred_fallthru
        _
      %p369 = scmp.le.s32.totalorder 2, %s12
      // Predicated region
      $region41: #{causal_conv1d.1} parent=5 // pred_check
        %p370 = pneg %p369
      $region42: #{causal_conv1d.1} parent=5 // pred_check_branch
        %372 = sbr.rel (%p370) target = $region44
      $region43: #{causal_conv1d.1} parent=5 // pred_region
        %s373 = ssub.s32 %s12, 2
        // Predicated region
        $region45: #{causal_conv1d.1} parent=43 // pred_check
          %p374 = pneg %p125
        $region46: #{causal_conv1d.1} parent=43 // pred_check_branch
          %376 = sbr.rel (%p374) target = $region48
        $region47: #{causal_conv1d.1} parent=43 // pred_region
          %s377 = sand.u32 %s110, 1
          %s378 = scalar_lea.sflag [#allocation4], %s377
          %s379 = sand.u32 %s110, 1
          %s380 = smul.addr %s379, 8
          %s381 = scalar_lea.vmem [#allocation3], %s380
          %382 = dma.done %s378, 128
        $region48: #{causal_conv1d.1} parent=43 // pred_fallthru
          _
      $region44: #{causal_conv1d.1} parent=5 // pred_fallthru
        _
    $region6: #{causal_conv1d.1} parent=1 // loop_footer
      %s16 = sadd.s32 1, %s12
    $region7: #{causal_conv1d.1} parent=1 // loop_footer_branch
      %11 = sbr.rel target = $region3
    $region8: #{causal_conv1d.1} parent=1 // loop_exit
      _
    %383 = vsyncpa [#allocation4], 1
    %s384 = scalar_lea.sflag [#allocation4], 1
    %385 = vsyncpa %s384, 1

</llo_original>
